<compile_context>
chip_gen: v7x
topology: tpu7x:2x2x1
jax: 0.10.0
libtpu: 0.0.40
codegen_flags: <defaults>
</compile_context>

<pallas_src>
import jax
import jax.numpy as jnp
from jax.experimental import pallas as pl
from jax.experimental.pallas import tpu as pltpu

EPS = 1e-5


def _round_up(n, m):
    return ((n + m - 1) // m) * m


def make_mlp_kernel(H, T):
    def mlp_kernel(x_ref, w1_ref, w2_ref, w3_ref, bias_ref, o_ref):
        b1 = bias_ref[0:1, :H]
        b2 = bias_ref[1:2, :H]
        b3 = bias_ref[2:3, :T]
        h = jnp.dot(x_ref[...], w1_ref[...],
                    preferred_element_type=jnp.float32) + b1
        h = jnp.maximum(h, 0.0)
        h = jnp.dot(h, w2_ref[...],
                    preferred_element_type=jnp.float32) + b2
        h = jnp.maximum(h, 0.0)
        o_ref[...] = (jnp.dot(h, w3_ref[...],
                              preferred_element_type=jnp.float32) + b3
                      ).astype(o_ref.dtype)
    return mlp_kernel


def weight_norm_effective(v, g):
    # nn.utils.weight_norm default dim=0: w[i, :] = g[i] * v[i, :] / ||v[i, :]||
    norm = jnp.sqrt(jnp.sum(v * v, axis=1, keepdims=True))
    return (g[:, None] / norm) * v


def prepare_params(params):
    """One-time prep: weight-norm + BN(eval) folding. No feature padding.

    Returns (w1, w2, w3, bias_pack), (F, H, T).
    Only valid for eval-mode BN (running stats), which is the stated semantics.
    """
    (g1, b1, m1, v1, v_w1, g_w1, c1,
     g2, b2, m2, v2, v_w2, g_w2, c2,
     g3, b3, m3, v3, v_w3, g_w3, c3) = params

    def fold(gamma, beta, mean, var, v_w, g_w, c):
        w_io = weight_norm_effective(v_w, g_w).T          # (in, out)
        scale = gamma * jax.lax.rsqrt(var + EPS)          # (in,)
        shift = beta - mean * scale                       # (in,)
        w_eff = scale[:, None] * w_io                     # BN scale into input dim
        b_eff = shift @ w_io + c                          # BN shift into bias
        return w_eff.astype(jnp.float32), b_eff.astype(jnp.float32)

    w1, bb1 = fold(g1, b1, m1, v1, v_w1, g_w1, c1)
    w2, bb2 = fold(g2, b2, m2, v2, v_w2, g_w2, c2)
    w3, bb3 = fold(g3, b3, m3, v3, v_w3, g_w3, c3)

    F, H = w1.shape
    T = w3.shape[1]
    P = max(H, T)
    bias = (jnp.zeros((3, P), jnp.float32)
            .at[0, :H].set(bb1)
            .at[1, :H].set(bb2)
            .at[2, :T].set(bb3))
    return (w1, w2, w3, bias), (F, H, T)


def mlp_forward(x, prepared, dims, *, max_tile_b=1024):
    w1, w2, w3, bias = prepared
    F, H, T = dims
    B = x.shape[0]
    if x.dtype != jnp.float32:
        x = x.astype(jnp.float32)

    # Batch tiling policy:
    #  - tiles are multiples of 8 (f32 sublane), at most max_tile_b rows,
    #  - padding bounded to <= 7 rows per tile (zero when 8 | B and tiles fit),
    #  - at least 2 grid steps when B >= 16 so the "parallel" axis can shard
    #    across the two TensorCores on megacore parts (v7x).
    B8 = _round_up(B, 8)
    num_steps = max(pl.cdiv(B8, max_tile_b), 2 if B8 >= 16 else 1)
    tile_b = _round_up(pl.cdiv(B8, num_steps), 8)
    B_pad = tile_b * num_steps

    if B_pad != B:
        x_in = jnp.pad(x, ((0, B_pad - B), (0, 0)))   # small batch-only pad
    else:
        x_in = x                                       # no wrapper-side copy

    out = pl.pallas_call(
        make_mlp_kernel(H, T),
        out_shape=jax.ShapeDtypeStruct((B_pad, T), jnp.float32),
        grid=(num_steps,),
        in_specs=[
            pl.BlockSpec((tile_b, F), lambda i: (i, 0)),  # batch-tiled input
            pl.BlockSpec((F, H), lambda i: (0, 0)),       # resident weights
            pl.BlockSpec((H, H), lambda i: (0, 0)),       # (full-dim blocks)
            pl.BlockSpec((H, T), lambda i: (0, 0)),
            pl.BlockSpec(bias.shape, lambda i: (0, 0)),   # packed biases
        ],
        out_specs=pl.BlockSpec((tile_b, T), lambda i: (i, 0)),
        compiler_params=pltpu.CompilerParams(
            dimension_semantics=("parallel",)),
    )(x_in, w1, w2, w3, bias)
    return out if B_pad == B else out[:B]


def mlp_reference(x, params):
    (g1, b1, m1, v1, v_w1, g_w1, c1,
     g2, b2, m2, v2, v_w2, g_w2, c2,
     g3, b3, m3, v3, v_w3, g_w3, c3) = params
    w1 = weight_norm_effective(v_w1, g_w1)
    w2 = weight_norm_effective(v_w2, g_w2)
    w3 = weight_norm_effective(v_w3, g_w3)
    h = (x - m1) * g1 / jnp.sqrt(v1 + EPS) + b1
    h = jnp.maximum(h @ w1.T + c1, 0.0)
    h = (h - m2) * g2 / jnp.sqrt(v2 + EPS) + b2
    h = jnp.maximum(h @ w2.T + c2, 0.0)
    h = (h - m3) * g3 / jnp.sqrt(v3 + EPS) + b3
    return h @ w3.T + c3


if __name__ == "__main__":
    batch = 8
    num_features = 16
    hidden_size = 32
    num_targets = 8

    key = jax.random.PRNGKey(0)
    ks = jax.random.split(key, 20)

    x = jax.random.normal(ks[0], (batch, num_features), dtype=jnp.float32)

    def bn_params(k, dim):
        k1, k2, k3 = jax.random.split(k, 3)
        gamma = 1.0 + 0.1 * jax.random.normal(k1, (dim,), jnp.float32)
        beta = 0.1 * jax.random.normal(k2, (dim,), jnp.float32)
        mean = 0.1 * jax.random.normal(k3, (dim,), jnp.float32)
        var = jnp.ones((dim,), jnp.float32) * 0.9
        return gamma, beta, mean, var

    g1, b1, m1, v1 = bn_params(ks[1], num_features)
    g2, b2, m2, v2 = bn_params(ks[2], hidden_size)
    g3, b3, m3, v3 = bn_params(ks[3], hidden_size)

    v_w1 = jax.random.normal(ks[4], (hidden_size, num_features), jnp.float32) * 0.2
    g_w1 = jnp.sqrt(jnp.sum(v_w1 * v_w1, axis=1))  # torch weight_norm init: g = ||v||
    c1 = 0.05 * jax.random.normal(ks[5], (hidden_size,), jnp.float32)

    v_w2 = jax.random.normal(ks[6], (hidden_size, hidden_size), jnp.float32) * 0.2
    g_w2 = jnp.sqrt(jnp.sum(v_w2 * v_w2, axis=1))
    c2 = 0.05 * jax.random.normal(ks[7], (hidden_size,), jnp.float32)

    v_w3 = jax.random.normal(ks[8], (num_targets, hidden_size), jnp.float32) * 0.2
    g_w3 = jnp.sqrt(jnp.sum(v_w3 * v_w3, axis=1))
    c3 = 0.05 * jax.random.normal(ks[9], (num_targets,), jnp.float32)

    params = (g1, b1, m1, v1, v_w1, g_w1, c1,
              g2, b2, m2, v2, v_w2, g_w2, c2,
              g3, b3, m3, v3, v_w3, g_w3, c3)

    # One-time parameter prep (hoisted out of the per-call path).
    prepared, dims = prepare_params(params)
    prepared = jax.block_until_ready(prepared)

    # Dropout layers are identity in eval mode (inference semantics).
    out = jax.block_until_ready(mlp_forward(x, prepared, dims))
    ref = mlp_reference(x, params)
    assert out.shape == (batch, num_targets)
    assert jnp.allclose(out, ref, atol=1e-4, rtol=1e-4)
    print("KERNEL_OK")
</pallas_src>

<mosaic_0001>
module attributes {stable_mosaic.version = 11 : i64} {
  func.func @mlp_kernel(%arg0: i32, %arg1: memref<8x16xf32, #tpu.memory_space<vmem>>, %arg2: memref<16x32xf32, #tpu.memory_space<vmem>>, %arg3: memref<32x32xf32, #tpu.memory_space<vmem>>, %arg4: memref<32x8xf32, #tpu.memory_space<vmem>>, %arg5: memref<3x32xf32, #tpu.memory_space<vmem>>, %arg6: memref<8x8xf32, #tpu.memory_space<vmem>>) attributes {dimension_semantics = [#tpu.dimension_semantics<parallel>], iteration_bounds = array<i64: 1>, scalar_prefetch = 0 : i64, scratch_operands = 0 : i64, tpu.core_type = #tpu.core_type<tc>, window_params = [{transform_indices = @transform_0, window_bounds = array<i64: 8, 16>}, {pipeline_mode = #tpu.pipeline_mode<synchronous>, transform_indices = @transform_1, window_bounds = array<i64: 16, 32>}, {pipeline_mode = #tpu.pipeline_mode<synchronous>, transform_indices = @transform_2, window_bounds = array<i64: 32, 32>}, {pipeline_mode = #tpu.pipeline_mode<synchronous>, transform_indices = @transform_3, window_bounds = array<i64: 32, 8>}, {pipeline_mode = #tpu.pipeline_mode<synchronous>, transform_indices = @transform_4, window_bounds = array<i64: 3, 32>}, {transform_indices = @transform_5, window_bounds = array<i64: 8, 8>}]} {
    %c0 = arith.constant 0 : index
    %c0_0 = arith.constant 0 : index
    %0 = vector.load %arg5[%c0, %c0_0] : memref<3x32xf32, #tpu.memory_space<vmem>>, vector<1x32xf32>
    %c1 = arith.constant 1 : index
    %c0_1 = arith.constant 0 : index
    %1 = vector.load %arg5[%c1, %c0_1] : memref<3x32xf32, #tpu.memory_space<vmem>>, vector<1x32xf32>
    %c2 = arith.constant 2 : index
    %c0_2 = arith.constant 0 : index
    %2 = vector.load %arg5[%c2, %c0_2] : memref<3x32xf32, #tpu.memory_space<vmem>>, vector<1x8xf32>
    %c0_3 = arith.constant 0 : index
    %c0_4 = arith.constant 0 : index
    %3 = vector.load %arg1[%c0_3, %c0_4] : memref<8x16xf32, #tpu.memory_space<vmem>>, vector<8x16xf32>
    %c0_5 = arith.constant 0 : index
    %c0_6 = arith.constant 0 : index
    %4 = vector.load %arg2[%c0_5, %c0_6] : memref<16x32xf32, #tpu.memory_space<vmem>>, vector<16x32xf32>
    %cst = arith.constant dense<0.000000e+00> : vector<8x32xf32>
    %5 = tpu.matmul %3, %4, %cst {dimension_numbers = #tpu.dot_dimension_numbers<[1], [0], [0], [1], [0, 0, 1, 1], [], []>} : vector<8x16xf32>, vector<16x32xf32>, vector<8x32xf32> -> vector<8x32xf32>
    %6 = vector.broadcast %0 : vector<1x32xf32> to vector<8x32xf32>
    %7 = arith.addf %5, %6 : vector<8x32xf32>
    %cst_7 = arith.constant 0.000000e+00 : f32
    %8 = vector.broadcast %cst_7 : f32 to vector<8x32xf32>
    %9 = arith.maximumf %7, %8 : vector<8x32xf32>
    %c0_8 = arith.constant 0 : index
    %c0_9 = arith.constant 0 : index
    %10 = vector.load %arg3[%c0_8, %c0_9] : memref<32x32xf32, #tpu.memory_space<vmem>>, vector<32x32xf32>
    %cst_10 = arith.constant dense<0.000000e+00> : vector<8x32xf32>
    %11 = tpu.matmul %9, %10, %cst_10 {dimension_numbers = #tpu.dot_dimension_numbers<[1], [0], [0], [1], [0, 0, 1, 1], [], []>} : vector<8x32xf32>, vector<32x32xf32>, vector<8x32xf32> -> vector<8x32xf32>
    %12 = vector.broadcast %1 : vector<1x32xf32> to vector<8x32xf32>
    %13 = arith.addf %11, %12 : vector<8x32xf32>
    %cst_11 = arith.constant 0.000000e+00 : f32
    %14 = vector.broadcast %cst_11 : f32 to vector<8x32xf32>
    %15 = arith.maximumf %13, %14 : vector<8x32xf32>
    %c0_12 = arith.constant 0 : index
    %c0_13 = arith.constant 0 : index
    %16 = vector.load %arg4[%c0_12, %c0_13] : memref<32x8xf32, #tpu.memory_space<vmem>>, vector<32x8xf32>
    %cst_14 = arith.constant dense<0.000000e+00> : vector<8x8xf32>
    %17 = tpu.matmul %15, %16, %cst_14 {dimension_numbers = #tpu.dot_dimension_numbers<[1], [0], [0], [1], [0, 0, 1, 1], [], []>} : vector<8x32xf32>, vector<32x8xf32>, vector<8x8xf32> -> vector<8x8xf32>
    %18 = vector.broadcast %2 : vector<1x8xf32> to vector<8x8xf32>
    %19 = arith.addf %17, %18 : vector<8x8xf32>
    %c0_15 = arith.constant 0 : index
    %c0_16 = arith.constant 0 : index
    %20 = vector.load %arg6[%c0_15, %c0_16] : memref<8x8xf32, #tpu.memory_space<vmem>>, vector<8x8xf32>
    tpu.vector_store %arg6[%c0_15, %c0_16], %19 {strides = array<i32>} : memref<8x8xf32, #tpu.memory_space<vmem>>, vector<8x8xf32>,
    return
  }
  func.func @transform_0(%arg0: i32) -> (i32, i32) {
    %c0_i32 = arith.constant 0 : i32
    %c0_i32_0 = arith.constant 0 : i32
    return %arg0, %c0_i32 : i32, i32
  }
  func.func @transform_1(%arg0: i32) -> (i32, i32) {
    %c0_i32 = arith.constant 0 : i32
    %c0_i32_0 = arith.constant 0 : i32
    %c0_i32_1 = arith.constant 0 : i32
    return %c0_i32, %c0_i32_0 : i32, i32
  }
  func.func @transform_2(%arg0: i32) -> (i32, i32) {
    %c0_i32 = arith.constant 0 : i32
    %c0_i32_0 = arith.constant 0 : i32
    %c0_i32_1 = arith.constant 0 : i32
    return %c0_i32, %c0_i32_0 : i32, i32
  }
  func.func @transform_3(%arg0: i32) -> (i32, i32) {
    %c0_i32 = arith.constant 0 : i32
    %c0_i32_0 = arith.constant 0 : i32
    %c0_i32_1 = arith.constant 0 : i32
    return %c0_i32, %c0_i32_0 : i32, i32
  }
  func.func @transform_4(%arg0: i32) -> (i32, i32) {
    %c0_i32 = arith.constant 0 : i32
    %c0_i32_0 = arith.constant 0 : i32
    %c0_i32_1 = arith.constant 0 : i32
    return %c0_i32, %c0_i32_0 : i32, i32
  }
  func.func @transform_5(%arg0: i32) -> (i32, i32) {
    %c0_i32 = arith.constant 0 : i32
    %c0_i32_0 = arith.constant 0 : i32
    return %arg0, %c0_i32 : i32, i32
  }
}

</mosaic_0001>

<llo_original>
// kernel: tpu_custom_call.1
$region0: #{tpu_custom_call.1}
  #allocation0 [shape = 'u32[]', space=smem, size = 0x4, offset = 0x4, fixed_abs, tag = 'smem constant byte address 0x4 - core index']
  #allocation1 [shape = 'u32[144,128]{1,0:T(1,128)}', space=vmem, size = 0x12000, scoped, tag = 'internal scratch']
  %s0 = inlined_call_operand.vmem [shape: f32[8,16], index: 0, kind: input, shape index: {}]
  %s1 = inlined_call_operand.hbm [shape: f32[16,32], index: 1, kind: input, shape index: {}]
  %s2 = inlined_call_operand.vmem [shape: f32[32,32], index: 2, kind: input, shape index: {}]
  %s3 = inlined_call_operand.vmem [shape: f32[32,8], index: 3, kind: input, shape index: {}]
  %s4 = inlined_call_operand.vmem [shape: f32[3,32], index: 4, kind: input, shape index: {}]
  %s5 = inlined_call_operand.hbm [shape: f32[8,8], index: 5, kind: output, shape index: {}]
  %s6 = sld [smem:[#allocation0]]
  $region34: #{tpu_custom_call.1} parent=0
    _
  %s8 = ssub.s32 1, %s6
  %s9 = scalar_select 0, %s8, %s6
  $region1: #{tpu_custom_call.1} parent=0
    #allocation2 [shape = 'u8[8192]{0}', space=vmem, size = 0x2000, scoped, tag = 'input window, operand 1, single buffered']
    #allocation3 [shape = 's32[1]{0}', space=sflag, size = 0x4, scoped, tag = 'scoped memory for tpu_custom_call.1']
    #allocation4 [shape = 's32[1]{0}', space=sflag, size = 0x4, scoped, tag = 'scoped memory for tpu_custom_call.1']
    #allocation5 [shape = 'u8[4096]{0}', space=vmem, size = 0x1000, scoped, tag = 'output window, operand 0, single buffered']
    %10 = vsyncpa [#allocation3], 0
    %11 = vsyncpa [#allocation4], 0
    // Predicated region
    $region2: #{tpu_custom_call.1} parent=1 // pred_check
      _
    $region3: #{tpu_custom_call.1} parent=1 // pred_check_branch
      %13 = sbr.rel (0) target = $region5
    $region4: #{tpu_custom_call.1} parent=1 // pred_region
      _
    $region5: #{tpu_custom_call.1} parent=1 // pred_fallthru
      _
    // Predicated region
    $region6: #{tpu_custom_call.1} parent=1 // pred_check
      _
    $region7: #{tpu_custom_call.1} parent=1 // pred_check_branch
      %15 = sbr.rel (0) target = $region9
    $region8: #{tpu_custom_call.1} parent=1 // pred_region
      %s17 = ssub.s32 256, 256
      %18 = vsyncadd [#allocation3], %s17
      %s19 = sshll.u32 [#allocation2], 4
      %s20 = int_to_ptr.vmem [resolvable:$true] %s19
      %25 = dma.hbm_to_vmem [thread:$0]  %s1, 256, %s20, [#allocation3], 128, 128, 8
    $region9: #{tpu_custom_call.1} parent=1 // pred_fallthru
      _
    // Predicated region
    $region10: #{tpu_custom_call.1} parent=1 // pred_check
      _
    $region11: #{tpu_custom_call.1} parent=1 // pred_check_branch
      %27 = sbr.rel (0) target = $region13
    $region12: #{tpu_custom_call.1} parent=1 // pred_region
      _
    $region13: #{tpu_custom_call.1} parent=1 // pred_fallthru
      _
    // Predicated region
    $region14: #{tpu_custom_call.1} parent=1 // pred_check
      _
    $region15: #{tpu_custom_call.1} parent=1 // pred_check_branch
      %29 = sbr.rel (0) target = $region17
    $region16: #{tpu_custom_call.1} parent=1 // pred_region
      _
    $region17: #{tpu_custom_call.1} parent=1 // pred_fallthru
      _
    // Predicated region
    $region18: #{tpu_custom_call.1} parent=1 // pred_check
      _
    $region19: #{tpu_custom_call.1} parent=1 // pred_check_branch
      %31 = sbr.rel (0) target = $region21
    $region20: #{tpu_custom_call.1} parent=1 // pred_region
      _
    $region21: #{tpu_custom_call.1} parent=1 // pred_fallthru
      _
    // Predicated region
    $region22: #{tpu_custom_call.1} parent=1 // pred_check
      _
    $region23: #{tpu_custom_call.1} parent=1 // pred_check_branch
      %33 = sbr.rel (0) target = $region25
    $region24: #{tpu_custom_call.1} parent=1 // pred_region
      %34 = dma.done [#allocation3], 256
    $region25: #{tpu_custom_call.1} parent=1 // pred_fallthru
      _
    %v35 = vld [vmem:[%s4] sm:$0x1]
    %v36 = vld [vmem:[%s4 + $0x1] sm:$0x1]
    %v37 = vld [vmem:[%s4 + $0x2] sm:$0x1]
    %v38 = vld [vmem:[%s0] sm:$0xff]
    %v39 = vld [vmem:[#allocation2] sm:$0xff]
    %v40 = vld [vmem:[#allocation2 + $0x8] sm:$0xff]
    %v41 = vlaneseq
    %v42 = vshrl.u32 %v41, 7
    %v43 = vsub.s32 0, %v42
    %v44 = vrot.slane %v35, %v43
    %vm45 = vcmask 130048
    %v47 = vsel %vm45, %v38, 0
    %49 = vmatprep.subr.mxu0 0.0
    %50 = vmatpush1.msra.mxu0 %v39
    %51 = vmatprep.subr.mxu0 0.0
    %52 = vmatpush1.msra.mxu0 %v40
    %53 = vmatprep.subr.mxu0 0.0
    %54 = vmatpush1.msra.mxu0 0.0
    %55 = vmatprep.subr.mxu0 0.0
    %56 = vmatpush1.msra.mxu0 0.0
    %57 = vmatprep.subr.mxu0 0.0
    %58 = vmatpush1.msra.mxu0 0.0
    %59 = vmatprep.subr.mxu0 0.0
    %60 = vmatpush1.msra.mxu0 0.0
    %61 = vmatprep.subr.mxu0 0.0
    %62 = vmatpush1.msra.mxu0 0.0
    %63 = vmatprep.subr.mxu0 0.0
    %64 = vmatpush1.msra.mxu0 0.0
    %65 = vmatprep.subr.mxu0 0.0
    %66 = vmatpush1.msra.mxu0 0.0
    %67 = vmatprep.subr.mxu0 0.0
    %68 = vmatpush1.msra.mxu0 0.0
    %69 = vmatprep.subr.mxu0 0.0
    %70 = vmatpush1.msra.mxu0 0.0
    %71 = vmatprep.subr.mxu0 0.0
    %72 = vmatpush1.msra.mxu0 0.0
    %73 = vmatprep.subr.mxu0 0.0
    %74 = vmatpush1.msra.mxu0 0.0
    %75 = vmatprep.subr.mxu0 0.0
    %76 = vmatpush1.msra.mxu0 0.0
    %77 = vmatprep.subr.mxu0 0.0
    %78 = vmatpush1.msra.mxu0 0.0
    %79 = vmatprep.subr.mxu0 0.0
    %80 = vmatpush1.msra.mxu0 0.0
    %81 = vmatprep.subr.mxu0 0.0
    %82 = vmatpush1.msra.mxu0 0.0
    %83 = vmatprep.subr.mxu0 0.0
    %84 = vmatpush1.msra.mxu0 0.0
    %85 = vmatprep.subr.mxu0 0.0
    %86 = vmatpush1.msra.mxu0 0.0
    %87 = vmatprep.subr.mxu0 0.0
    %88 = vmatpush1.msra.mxu0 0.0
    %89 = vmatprep.subr.mxu0 0.0
    %90 = vmatpush1.msra.mxu0 0.0
    %91 = vmatprep.subr.mxu0 0.0
    %92 = vmatpush1.msra.mxu0 0.0
    %93 = vmatprep.subr.mxu0 0.0
    %94 = vmatpush1.msra.mxu0 0.0
    %95 = vmatprep.subr.mxu0 0.0
    %96 = vmatpush1.msra.mxu0 0.0
    %97 = vmatprep.subr.mxu0 0.0
    %98 = vmatpush1.msra.mxu0 0.0
    %99 = vmatprep.subr.mxu0 0.0
    %100 = vmatpush1.msra.mxu0 0.0
    %101 = vmatprep.subr.mxu0 0.0
    %102 = vmatpush1.msra.mxu0 0.0
    %103 = vmatprep.subr.mxu0 0.0
    %104 = vmatpush1.msra.mxu0 0.0
    %105 = vmatprep.subr.mxu0 0.0
    %106 = vmatpush1.msra.mxu0 0.0
    %107 = vmatprep.subr.mxu0 0.0
    %108 = vmatpush1.msra.mxu0 0.0
    %109 = vmatprep.subr.mxu0 0.0
    %110 = vmatpush1.msra.mxu0 0.0
    %111 = vmatprep.subr.mxu0 0.0
    %112 = vmatpush1.msra.mxu0 0.0
    %113 = vmatprep.mubr.f32.mxu0 0.0
    %114 = vmatmul.mubr.f32.gmra.mrb[0].mxu0 %v47
    %v115 = vpop.f32.mrb[0].mxu0
    %v116 = vadd.f32 %v44, %v115
    %v117 = vpop.f32.mrb[0].mxu0
    %118 = vdwg.mxu0
    %v119 = vmax.f32 %v116, 0.0
    %v120 = vld [vmem:[%s2] sm:$0xff]
    %v121 = vld [vmem:[%s2 + $0x8] sm:$0xff]
    %v122 = vld [vmem:[%s2 + $0x10] sm:$0xff]
    %v123 = vld [vmem:[%s2 + $0x18] sm:$0xff]
    %v124 = vlaneseq
    %v125 = vshrl.u32 %v124, 7
    %v126 = vsub.s32 0, %v125
    %v127 = vrot.slane %v36, %v126
    %vm128 = vcmask 261120
    %v130 = vsel %vm128, %v119, 0
    %132 = vmatprep.subr.mxu0 0.0
    %133 = vmatpush1.msra.mxu0 %v120
    %134 = vmatprep.subr.mxu0 0.0
    %135 = vmatpush1.msra.mxu0 %v121
    %136 = vmatprep.subr.mxu0 0.0
    %137 = vmatpush1.msra.mxu0 %v122
    %138 = vmatprep.subr.mxu0 0.0
    %139 = vmatpush1.msra.mxu0 %v123
    %140 = vmatprep.subr.mxu0 0.0
    %141 = vmatpush1.msra.mxu0 0.0
    %142 = vmatprep.subr.mxu0 0.0
    %143 = vmatpush1.msra.mxu0 0.0
    %144 = vmatprep.subr.mxu0 0.0
    %145 = vmatpush1.msra.mxu0 0.0
    %146 = vmatprep.subr.mxu0 0.0
    %147 = vmatpush1.msra.mxu0 0.0
    %148 = vmatprep.subr.mxu0 0.0
    %149 = vmatpush1.msra.mxu0 0.0
    %150 = vmatprep.subr.mxu0 0.0
    %151 = vmatpush1.msra.mxu0 0.0
    %152 = vmatprep.subr.mxu0 0.0
    %153 = vmatpush1.msra.mxu0 0.0
    %154 = vmatprep.subr.mxu0 0.0
    %155 = vmatpush1.msra.mxu0 0.0
    %156 = vmatprep.subr.mxu0 0.0
    %157 = vmatpush1.msra.mxu0 0.0
    %158 = vmatprep.subr.mxu0 0.0
    %159 = vmatpush1.msra.mxu0 0.0
    %160 = vmatprep.subr.mxu0 0.0
    %161 = vmatpush1.msra.mxu0 0.0
    %162 = vmatprep.subr.mxu0 0.0
    %163 = vmatpush1.msra.mxu0 0.0
    %164 = vmatprep.subr.mxu0 0.0
    %165 = vmatpush1.msra.mxu0 0.0
    %166 = vmatprep.subr.mxu0 0.0
    %167 = vmatpush1.msra.mxu0 0.0
    %168 = vmatprep.subr.mxu0 0.0
    %169 = vmatpush1.msra.mxu0 0.0
    %170 = vmatprep.subr.mxu0 0.0
    %171 = vmatpush1.msra.mxu0 0.0
    %172 = vmatprep.subr.mxu0 0.0
    %173 = vmatpush1.msra.mxu0 0.0
    %174 = vmatprep.subr.mxu0 0.0
    %175 = vmatpush1.msra.mxu0 0.0
    %176 = vmatprep.subr.mxu0 0.0
    %177 = vmatpush1.msra.mxu0 0.0
    %178 = vmatprep.subr.mxu0 0.0
    %179 = vmatpush1.msra.mxu0 0.0
    %180 = vmatprep.subr.mxu0 0.0
    %181 = vmatpush1.msra.mxu0 0.0
    %182 = vmatprep.subr.mxu0 0.0
    %183 = vmatpush1.msra.mxu0 0.0
    %184 = vmatprep.subr.mxu0 0.0
    %185 = vmatpush1.msra.mxu0 0.0
    %186 = vmatprep.subr.mxu0 0.0
    %187 = vmatpush1.msra.mxu0 0.0
    %188 = vmatprep.subr.mxu0 0.0
    %189 = vmatpush1.msra.mxu0 0.0
    %190 = vmatprep.subr.mxu0 0.0
    %191 = vmatpush1.msra.mxu0 0.0
    %192 = vmatprep.subr.mxu0 0.0
    %193 = vmatpush1.msra.mxu0 0.0
    %194 = vmatprep.subr.mxu0 0.0
    %195 = vmatpush1.msra.mxu0 0.0
    %196 = vmatprep.mubr.f32.mxu0 0.0
    %197 = vmatmul.mubr.f32.gmra.mrb[0].mxu0 %v130
    %v198 = vpop.f32.mrb[0].mxu0
    %v199 = vadd.f32 %v127, %v198
    %v200 = vpop.f32.mrb[0].mxu0
    %201 = vdwg.mxu0
    %v202 = vmax.f32 %v199, 0.0
    %v203 = vld [vmem:[%s3] sm:$0xff]
    %v204 = vld [vmem:[%s3 + $0x8] sm:$0xff]
    %v205 = vld [vmem:[%s3 + $0x10] sm:$0xff]
    %v206 = vld [vmem:[%s3 + $0x18] sm:$0xff]
    %v207 = vlaneseq
    %v208 = vshrl.u32 %v207, 7
    %v209 = vsub.s32 0, %v208
    %v210 = vrot.slane %v37, %v209
    %v212 = vsel %vm128, %v202, 0
    %214 = vmatprep.subr.mxu0 0.0
    %215 = vmatpush1.msra.mxu0 %v203
    %216 = vmatprep.subr.mxu0 0.0
    %217 = vmatpush1.msra.mxu0 %v204
    %218 = vmatprep.subr.mxu0 0.0
    %219 = vmatpush1.msra.mxu0 %v205
    %220 = vmatprep.subr.mxu0 0.0
    %221 = vmatpush1.msra.mxu0 %v206
    %222 = vmatprep.subr.mxu0 0.0
    %223 = vmatpush1.msra.mxu0 0.0
    %224 = vmatprep.subr.mxu0 0.0
    %225 = vmatpush1.msra.mxu0 0.0
    %226 = vmatprep.subr.mxu0 0.0
    %227 = vmatpush1.msra.mxu0 0.0
    %228 = vmatprep.subr.mxu0 0.0
    %229 = vmatpush1.msra.mxu0 0.0
    %230 = vmatprep.subr.mxu0 0.0
    %231 = vmatpush1.msra.mxu0 0.0
    %232 = vmatprep.subr.mxu0 0.0
    %233 = vmatpush1.msra.mxu0 0.0
    %234 = vmatprep.subr.mxu0 0.0
    %235 = vmatpush1.msra.mxu0 0.0
    %236 = vmatprep.subr.mxu0 0.0
    %237 = vmatpush1.msra.mxu0 0.0
    %238 = vmatprep.subr.mxu0 0.0
    %239 = vmatpush1.msra.mxu0 0.0
    %240 = vmatprep.subr.mxu0 0.0
    %241 = vmatpush1.msra.mxu0 0.0
    %242 = vmatprep.subr.mxu0 0.0
    %243 = vmatpush1.msra.mxu0 0.0
    %244 = vmatprep.subr.mxu0 0.0
    %245 = vmatpush1.msra.mxu0 0.0
    %246 = vmatprep.subr.mxu0 0.0
    %247 = vmatpush1.msra.mxu0 0.0
    %248 = vmatprep.subr.mxu0 0.0
    %249 = vmatpush1.msra.mxu0 0.0
    %250 = vmatprep.subr.mxu0 0.0
    %251 = vmatpush1.msra.mxu0 0.0
    %252 = vmatprep.subr.mxu0 0.0
    %253 = vmatpush1.msra.mxu0 0.0
    %254 = vmatprep.subr.mxu0 0.0
    %255 = vmatpush1.msra.mxu0 0.0
    %256 = vmatprep.subr.mxu0 0.0
    %257 = vmatpush1.msra.mxu0 0.0
    %258 = vmatprep.subr.mxu0 0.0
    %259 = vmatpush1.msra.mxu0 0.0
    %260 = vmatprep.subr.mxu0 0.0
    %261 = vmatpush1.msra.mxu0 0.0
    %262 = vmatprep.subr.mxu0 0.0
    %263 = vmatpush1.msra.mxu0 0.0
    %264 = vmatprep.subr.mxu0 0.0
    %265 = vmatpush1.msra.mxu0 0.0
    %266 = vmatprep.subr.mxu0 0.0
    %267 = vmatpush1.msra.mxu0 0.0
    %268 = vmatprep.subr.mxu0 0.0
    %269 = vmatpush1.msra.mxu0 0.0
    %270 = vmatprep.subr.mxu0 0.0
    %271 = vmatpush1.msra.mxu0 0.0
    %272 = vmatprep.subr.mxu0 0.0
    %273 = vmatpush1.msra.mxu0 0.0
    %274 = vmatprep.subr.mxu0 0.0
    %275 = vmatpush1.msra.mxu0 0.0
    %276 = vmatprep.subr.mxu0 0.0
    %277 = vmatpush1.msra.mxu0 0.0
    %278 = vmatprep.mubr.f32.mxu0 0.0
    %279 = vmatmul.mubr.f32.gmra.mrb[0].mxu0 %v212
    %v280 = vpop.f32.mrb[0].mxu0
    %v281 = vadd.f32 %v210, %v280
    %v282 = vpop.f32.mrb[0].mxu0
    %283 = vdwg.mxu0
    %vm284 = vcmask 64512
    %285 = vst.msk [vmem:[#allocation5] sm:$0xff] %vm284, %v281
    // Predicated region
    $region26: #{tpu_custom_call.1} parent=1 // pred_check
      _
    $region27: #{tpu_custom_call.1} parent=1 // pred_check_branch
      %287 = sbr.rel (0) target = $region29
    $region28: #{tpu_custom_call.1} parent=1 // pred_region
      %s289 = ssub.s32 128, 128
      %290 = vsyncadd [#allocation4], %s289
      %s292 = sshll.u32 [#allocation5], 4
      %s293 = int_to_ptr.vmem [resolvable:$true] %s292
      %295 = dma.vmem_to_hbm [thread:$0]  %s293, 128, %s5, [#allocation4]
    $region29: #{tpu_custom_call.1} parent=1 // pred_fallthru
      _
    // Predicated region
    $region30: #{tpu_custom_call.1} parent=1 // pred_check
      _
    $region31: #{tpu_custom_call.1} parent=1 // pred_check_branch
      %297 = sbr.rel (0) target = $region33
    $region32: #{tpu_custom_call.1} parent=1 // pred_region
      %298 = dma.done [#allocation4], 128
    $region33: #{tpu_custom_call.1} parent=1 // pred_fallthru
      _
    %299 = vsyncpa [#allocation3], 1
    %300 = vsyncpa [#allocation4], 1

</llo_original>
